<compile_context>
chip_gen: v6e
topology: v6e:2x2x1
jax: 0.10.0
libtpu: 0.0.40
codegen_flags: <defaults>
</compile_context>

<pallas_src>
import functools

import jax
import jax.numpy as jnp
import numpy as np
from jax import lax
from jax.experimental import pallas as pl
from jax.experimental.pallas import tpu as pltpu

EPS1 = 0.65   # args.epsilon
EPS2 = 0.4    # args.epsilon2
TAU = 0.03
TEMP = 0.07


def _avenet_kernel(v_ref, aud_ref, a_ref, logits_ref, *, t):
    # v_ref:      (B, C, HW)   all batch clips at time index j = program_id(0)
    # aud_ref:    (N, C)       all audio embeddings, N = B*t (VMEM-resident)
    # a_ref:      (1, B, HW)   self similarity maps for this time step
    # logits_ref: (1, B, N+2)  logits rows for the B clips of this time step
    j = pl.program_id(0)
    B, C, HW = v_ref.shape
    N = aud_ref.shape[0]

    v = v_ref[...]                                  # (B, C, HW)
    aud = aud_ref[...]                              # (N, C)

    # Cross similarity maps for every (clip-in-block, audio) pair in one
    # lane-dense batched matmul: A0[m, k, s] = sum_c aud[k, c] * v[m, c, s].
    aud_b = jnp.broadcast_to(aud[None], (B, N, C))  # (B, N, C)
    A0 = jnp.einsum('mkc,mcs->mks', aud_b, v,
                    preferred_element_type=jnp.float32)     # (B, N, HW)

    # Global clip index of each row in this block; one-hot over the audio axis
    # gives both the contrastive mask row and the "self" slice of A0.
    col_k = lax.broadcasted_iota(jnp.int32, (B, N), 1)
    row_g = lax.broadcasted_iota(jnp.int32, (B, N), 0) * t + j
    onehot = (col_k == row_g).astype(jnp.float32)            # (B, N)
    mask = 1.0 - 100.0 * onehot                              # rows of (1-100*eye)

    # A = A0 at k == global clip index (no separate matmul needed).
    A = jnp.sum(A0 * onehot[:, :, None], axis=1)             # (B, HW)

    inv_tau = 1.0 / TAU
    pos_all = jax.nn.sigmoid((A0 - EPS1) * inv_tau)          # (B, N, HW)
    pos = jax.nn.sigmoid((A - EPS1) * inv_tau)               # (B, HW)
    neg = 1.0 - jax.nn.sigmoid((A - EPS2) * inv_tau)         # (B, HW)

    sim = (jnp.sum(pos_all * A0, axis=-1) *
           pl.reciprocal(jnp.sum(pos_all, axis=-1), approx=True))        # (B, N)
    sim1 = (jnp.sum(pos * A, axis=-1, keepdims=True) *
            pl.reciprocal(jnp.sum(pos, axis=-1, keepdims=True), approx=True))
    sim2 = (jnp.sum(neg * A, axis=-1, keepdims=True) *
            pl.reciprocal(jnp.sum(neg, axis=-1, keepdims=True), approx=True))

    inv_temp = 1.0 / TEMP
    a_ref[0] = A
    logits_ref[0, :, 0:1] = sim1 * inv_temp
    logits_ref[0, :, 1:1 + N] = sim * mask * inv_temp
    logits_ref[0, :, 1 + N:2 + N] = sim2 * inv_temp


def avenet_attention(audio_features, video_features):
    """audio_features: (b*t, c) f32; video_features: (b, c, t, h, w) f32.

    Returns (A, logits, Pos, Neg) matching AVENet.forward (trimap/Neg branch).
    Requires h*w to be a multiple of 128 (or t == 1).
    """
    b, c, t, h, w = video_features.shape
    n = b * t
    hw = h * w

    # Free reshape only (contiguous merge of t,h,w) — no HBM transpose pass
    # over the video tensor; the BlockSpec slices one time step per grid step.
    v3 = video_features.astype(jnp.float32).reshape(b, c, t * hw)
    aud = audio_features.astype(jnp.float32)

    kernel = functools.partial(_avenet_kernel, t=t)
    a_tb, logits_tb = pl.pallas_call(
        kernel,
        out_shape=(jax.ShapeDtypeStruct((t, b, hw), jnp.float32),
                   jax.ShapeDtypeStruct((t, b, n + 2), jnp.float32)),
        grid_spec=pltpu.PrefetchScalarGridSpec(
            num_scalar_prefetch=0,
            grid=(t,),
            in_specs=[
                # all batch clips of one time step: (b, c, hw) slab
                pl.BlockSpec((b, c, hw), lambda j: (0, 0, j)),
                # all audio embeddings; constant index -> fetched once
                pl.BlockSpec((n, c), lambda j: (0, 0)),
            ],
            out_specs=[
                pl.BlockSpec((1, b, hw), lambda j: (j, 0, 0)),
                pl.BlockSpec((1, b, n + 2), lambda j: (j, 0, 0)),
            ],
        ),
        compiler_params=pltpu.CompilerParams(
            dimension_semantics=("parallel",)),
    )(v3, aud)

    # Tiny host-side re-orderings of the (small) outputs only.
    A = jnp.transpose(a_tb, (1, 0, 2)).reshape(n, 1, h, w)
    logits = jnp.transpose(logits_tb, (1, 0, 2)).reshape(n, n + 2)
    Pos = jax.nn.sigmoid((A - EPS1) / TAU)
    Neg = 1.0 - jax.nn.sigmoid((A - EPS2) / TAU)
    return A, logits, Pos, Neg


def avenet_reference(audio_features, video_features):
    """Pure-JAX reference mirroring the PyTorch forward."""
    b, c, t, h, w = video_features.shape
    n = b * t
    vf = jnp.transpose(video_features, (0, 2, 1, 3, 4)).reshape(n, c, h, w)
    aud = audio_features
    A = jnp.einsum('ncqa,nc->nqa', vf, aud)[:, None]          # (n,1,h,w)
    A0 = jnp.einsum('ncqa,kc->nkqa', vf, aud)                 # (n,n,h,w)
    sig = jax.nn.sigmoid
    Pos = sig((A - EPS1) / TAU)
    Pos2 = sig((A - EPS2) / TAU)
    Neg = 1.0 - Pos2
    Pos_all = sig((A0 - EPS1) / TAU)
    mask = 1.0 - 100.0 * jnp.eye(n, dtype=jnp.float32)
    sim1 = (Pos * A).reshape(n, 1, -1).sum(-1) / Pos.reshape(n, 1, -1).sum(-1)
    sim = ((Pos_all * A0).reshape(n, n, -1).sum(-1)
           / Pos_all.reshape(n, n, -1).sum(-1)) * mask
    sim2 = (Neg * A).reshape(n, 1, -1).sum(-1) / Neg.reshape(n, 1, -1).sum(-1)
    logits = jnp.concatenate([sim1, sim, sim2], axis=1) / TEMP
    return A, logits, Pos, Neg


if __name__ == "__main__":
    key = jax.random.PRNGKey(0)
    k1, k2 = jax.random.split(key)
    b, c, t, h, w = 2, 32, 4, 16, 16        # n = b*t = 8 clips, hw = 256
    video = 0.5 * jax.random.normal(k1, (b, c, t, h, w), dtype=jnp.float32)
    audio = 0.5 * jax.random.normal(k2, (b * t, c), dtype=jnp.float32)

    A, logits, Pos, Neg = avenet_attention(audio, video)
    jax.block_until_ready((A, logits, Pos, Neg))

    A_exp, logits_exp, _, _ = avenet_reference(audio, video)
    np.testing.assert_allclose(np.asarray(A), np.asarray(A_exp),
                               rtol=1e-3, atol=1e-3)
    np.testing.assert_allclose(np.asarray(logits), np.asarray(logits_exp),
                               rtol=1e-2, atol=1e-2)
    print("KERNEL_OK")
</pallas_src>

<mosaic_0001>
module attributes {stable_mosaic.version = 11 : i64} {
  func.func @_avenet_kernel(%arg0: i32, %arg1: memref<2x32x256xf32, #tpu.memory_space<vmem>>, %arg2: memref<8x32xf32, #tpu.memory_space<vmem>>, %arg3: memref<1x2x256xf32, #tpu.memory_space<vmem>>, %arg4: memref<1x2x10xf32, #tpu.memory_space<vmem>>) attributes {dimension_semantics = [#tpu.dimension_semantics<parallel>], iteration_bounds = array<i64: 4>, scalar_prefetch = 0 : i64, scratch_operands = 0 : i64, tpu.core_type = #tpu.core_type<tc>, window_params = [{transform_indices = @transform_0, window_bounds = array<i64: 2, 32, 256>}, {pipeline_mode = #tpu.pipeline_mode<synchronous>, transform_indices = @transform_1, window_bounds = array<i64: 8, 32>}, {transform_indices = @transform_2, window_bounds = array<i64: 1, 2, 256>}, {transform_indices = @transform_3, window_bounds = array<i64: 1, 2, 10>}]} {
    %c0 = arith.constant 0 : index
    %c0_0 = arith.constant 0 : index
    %c0_1 = arith.constant 0 : index
    %0 = vector.load %arg1[%c0, %c0_0, %c0_1] : memref<2x32x256xf32, #tpu.memory_space<vmem>>, vector<2x32x256xf32>
    %c0_2 = arith.constant 0 : index
    %c0_3 = arith.constant 0 : index
    %1 = vector.load %arg2[%c0_2, %c0_3] : memref<8x32xf32, #tpu.memory_space<vmem>>, vector<8x32xf32>
    %2 = vector.shape_cast %1 : vector<8x32xf32> to vector<1x8x32xf32>
    %3 = vector.shape_cast %2 : vector<1x8x32xf32> to vector<1x8x32xf32>
    %4 = vector.broadcast %3 : vector<1x8x32xf32> to vector<2x8x32xf32>
    "tpu.trace_start"() <{level = 10 : i32, message = "mkc,mcs->mks"}> : () -> ()
    %cst = arith.constant dense<0.000000e+00> : vector<2x8x256xf32>
    %5 = tpu.matmul %4, %0, %cst {dimension_numbers = #tpu.dot_dimension_numbers<[2], [1], [1], [2], [0, 0, 0, 1, 1, 2], [0], [0]>} : vector<2x8x32xf32>, vector<2x32x256xf32>, vector<2x8x256xf32> -> vector<2x8x256xf32>
    "tpu.trace_stop"() : () -> ()
    %6 = tpu.iota {dimensions = array<i32: 1>} : vector<2x8xi32>
    %7 = tpu.iota {dimensions = array<i32: 0>} : vector<2x8xi32>
    %c4_i32 = arith.constant 4 : i32
    %8 = vector.broadcast %c4_i32 : i32 to vector<2x8xi32>
    %9 = arith.muli %7, %8 : vector<2x8xi32>
    %10 = vector.broadcast %arg0 : i32 to vector<2x8xi32>
    %11 = arith.addi %9, %10 : vector<2x8xi32>
    %12 = arith.cmpi eq, %6, %11 : vector<2x8xi32>
    %13 = arith.extui %12 : vector<2x8xi1> to vector<2x8xi32>
    %14 = arith.sitofp %13 : vector<2x8xi32> to vector<2x8xf32>
    %cst_4 = arith.constant 1.000000e+02 : f32
    %15 = vector.broadcast %cst_4 : f32 to vector<2x8xf32>
    %16 = arith.mulf %15, %14 : vector<2x8xf32>
    %cst_5 = arith.constant 1.000000e+00 : f32
    %17 = vector.broadcast %cst_5 : f32 to vector<2x8xf32>
    %18 = arith.subf %17, %16 : vector<2x8xf32>
    %19 = vector.shape_cast %14 : vector<2x8xf32> to vector<2x8x1xf32>
    %20 = vector.broadcast %19 : vector<2x8x1xf32> to vector<2x8x256xf32>
    %21 = arith.mulf %5, %20 : vector<2x8x256xf32>
    %cst_6 = arith.constant dense<0.000000e+00> : vector<2x256xf32>
    %22 = vector.multi_reduction <add>, %21, %cst_6 [1] : vector<2x8x256xf32> to vector<2x256xf32>
    %cst_7 = arith.constant 6.500000e-01 : f32
    %23 = vector.broadcast %cst_7 : f32 to vector<2x8x256xf32>
    %24 = arith.subf %5, %23 : vector<2x8x256xf32>
    %cst_8 = arith.constant 33.3333321 : f32
    %25 = vector.broadcast %cst_8 : f32 to vector<2x8x256xf32>
    %26 = arith.mulf %24, %25 : vector<2x8x256xf32>
    %27 = arith.negf %26 : vector<2x8x256xf32>
    %28 = math.exp %27 : vector<2x8x256xf32>
    %cst_9 = arith.constant 1.000000e+00 : f32
    %29 = vector.broadcast %cst_9 : f32 to vector<2x8x256xf32>
    %30 = arith.addf %29, %28 : vector<2x8x256xf32>
    %31 = arith.divf %29, %30 : vector<2x8x256xf32>
    %cst_10 = arith.constant 6.500000e-01 : f32
    %32 = vector.broadcast %cst_10 : f32 to vector<2x256xf32>
    %33 = arith.subf %22, %32 : vector<2x256xf32>
    %cst_11 = arith.constant 33.3333321 : f32
    %34 = vector.broadcast %cst_11 : f32 to vector<2x256xf32>
    %35 = arith.mulf %33, %34 : vector<2x256xf32>
    %36 = arith.negf %35 : vector<2x256xf32>
    %37 = math.exp %36 : vector<2x256xf32>
    %cst_12 = arith.constant 1.000000e+00 : f32
    %38 = vector.broadcast %cst_12 : f32 to vector<2x256xf32>
    %39 = arith.addf %38, %37 : vector<2x256xf32>
    %40 = arith.divf %38, %39 : vector<2x256xf32>
    %cst_13 = arith.constant 4.000000e-01 : f32
    %41 = vector.broadcast %cst_13 : f32 to vector<2x256xf32>
    %42 = arith.subf %22, %41 : vector<2x256xf32>
    %cst_14 = arith.constant 33.3333321 : f32
    %43 = vector.broadcast %cst_14 : f32 to vector<2x256xf32>
    %44 = arith.mulf %42, %43 : vector<2x256xf32>
    %45 = arith.negf %44 : vector<2x256xf32>
    %46 = math.exp %45 : vector<2x256xf32>
    %cst_15 = arith.constant 1.000000e+00 : f32
    %47 = vector.broadcast %cst_15 : f32 to vector<2x256xf32>
    %48 = arith.addf %47, %46 : vector<2x256xf32>
    %49 = arith.divf %47, %48 : vector<2x256xf32>
    %cst_16 = arith.constant 1.000000e+00 : f32
    %50 = vector.broadcast %cst_16 : f32 to vector<2x256xf32>
    %51 = arith.subf %50, %49 : vector<2x256xf32>
    %52 = arith.mulf %31, %5 : vector<2x8x256xf32>
    %cst_17 = arith.constant dense<0.000000e+00> : vector<2x8xf32>
    %53 = vector.multi_reduction <add>, %52, %cst_17 [2] : vector<2x8x256xf32> to vector<2x8xf32>
    %cst_18 = arith.constant dense<0.000000e+00> : vector<2x8xf32>
    %54 = vector.multi_reduction <add>, %31, %cst_18 [2] : vector<2x8x256xf32> to vector<2x8xf32>
    %55 = tpu.reciprocal %54 {approx = true} : vector<2x8xf32> -> vector<2x8xf32>
    %56 = arith.mulf %53, %55 : vector<2x8xf32>
    %57 = arith.mulf %40, %22 : vector<2x256xf32>
    %cst_19 = arith.constant dense<0.000000e+00> : vector<2xf32>
    %58 = vector.multi_reduction <add>, %57, %cst_19 [1] : vector<2x256xf32> to vector<2xf32>
    %59 = vector.shape_cast %58 : vector<2xf32> to vector<2x1xf32>
    %cst_20 = arith.constant dense<0.000000e+00> : vector<2xf32>
    %60 = vector.multi_reduction <add>, %40, %cst_20 [1] : vector<2x256xf32> to vector<2xf32>
    %61 = vector.shape_cast %60 : vector<2xf32> to vector<2x1xf32>
    %62 = tpu.reciprocal %61 {approx = true} : vector<2x1xf32> -> vector<2x1xf32>
    %63 = arith.mulf %59, %62 : vector<2x1xf32>
    %64 = arith.mulf %51, %22 : vector<2x256xf32>
    %cst_21 = arith.constant dense<0.000000e+00> : vector<2xf32>
    %65 = vector.multi_reduction <add>, %64, %cst_21 [1] : vector<2x256xf32> to vector<2xf32>
    %66 = vector.shape_cast %65 : vector<2xf32> to vector<2x1xf32>
    %cst_22 = arith.constant dense<0.000000e+00> : vector<2xf32>
    %67 = vector.multi_reduction <add>, %51, %cst_22 [1] : vector<2x256xf32> to vector<2xf32>
    %68 = vector.shape_cast %67 : vector<2xf32> to vector<2x1xf32>
    %69 = tpu.reciprocal %68 {approx = true} : vector<2x1xf32> -> vector<2x1xf32>
    %70 = arith.mulf %66, %69 : vector<2x1xf32>
    %c0_23 = arith.constant 0 : index
    %c0_24 = arith.constant 0 : index
    %c0_25 = arith.constant 0 : index
    %71 = vector.load %arg3[%c0_23, %c0_24, %c0_25] : memref<1x2x256xf32, #tpu.memory_space<vmem>>, vector<1x2x256xf32>
    %72 = vector.shape_cast %71 : vector<1x2x256xf32> to vector<2x256xf32>
    %73 = vector.shape_cast %22 : vector<2x256xf32> to vector<1x2x256xf32>
    tpu.vector_store %arg3[%c0_23, %c0_24, %c0_25], %73 {strides = array<i32>} : memref<1x2x256xf32, #tpu.memory_space<vmem>>, vector<1x2x256xf32>,
    %cst_26 = arith.constant 14.2857141 : f32
    %74 = vector.broadcast %cst_26 : f32 to vector<2x1xf32>
    %75 = arith.mulf %63, %74 : vector<2x1xf32>
    %c0_27 = arith.constant 0 : index
    %c0_28 = arith.constant 0 : index
    %c0_29 = arith.constant 0 : index
    %76 = vector.load %arg4[%c0_27, %c0_28, %c0_29] : memref<1x2x10xf32, #tpu.memory_space<vmem>>, vector<1x2x1xf32>
    %77 = vector.shape_cast %76 : vector<1x2x1xf32> to vector<2x1xf32>
    %78 = vector.shape_cast %75 : vector<2x1xf32> to vector<1x2x1xf32>
    tpu.vector_store %arg4[%c0_27, %c0_28, %c0_29], %78 {strides = array<i32>} : memref<1x2x10xf32, #tpu.memory_space<vmem>>, vector<1x2x1xf32>,
    %79 = arith.mulf %56, %18 : vector<2x8xf32>
    %cst_30 = arith.constant 14.2857141 : f32
    %80 = vector.broadcast %cst_30 : f32 to vector<2x8xf32>
    %81 = arith.mulf %79, %80 : vector<2x8xf32>
    %c0_31 = arith.constant 0 : index
    %c0_32 = arith.constant 0 : index
    %c1 = arith.constant 1 : index
    %82 = vector.load %arg4[%c0_31, %c0_32, %c1] : memref<1x2x10xf32, #tpu.memory_space<vmem>>, vector<1x2x8xf32>
    %83 = vector.shape_cast %82 : vector<1x2x8xf32> to vector<2x8xf32>
    %84 = vector.shape_cast %81 : vector<2x8xf32> to vector<1x2x8xf32>
    tpu.vector_store %arg4[%c0_31, %c0_32, %c1], %84 {strides = array<i32>} : memref<1x2x10xf32, #tpu.memory_space<vmem>>, vector<1x2x8xf32>,
    %cst_33 = arith.constant 14.2857141 : f32
    %85 = vector.broadcast %cst_33 : f32 to vector<2x1xf32>
    %86 = arith.mulf %70, %85 : vector<2x1xf32>
    %c0_34 = arith.constant 0 : index
    %c0_35 = arith.constant 0 : index
    %c9 = arith.constant 9 : index
    %87 = vector.load %arg4[%c0_34, %c0_35, %c9] : memref<1x2x10xf32, #tpu.memory_space<vmem>>, vector<1x2x1xf32>
    %88 = vector.shape_cast %87 : vector<1x2x1xf32> to vector<2x1xf32>
    %89 = vector.shape_cast %86 : vector<2x1xf32> to vector<1x2x1xf32>
    tpu.vector_store %arg4[%c0_34, %c0_35, %c9], %89 {strides = array<i32>} : memref<1x2x10xf32, #tpu.memory_space<vmem>>, vector<1x2x1xf32>,
    return
  }
  func.func @transform_0(%arg0: i32) -> (i32, i32, i32) {
    %c0_i32 = arith.constant 0 : i32
    %c0_i32_0 = arith.constant 0 : i32
    %c0_i32_1 = arith.constant 0 : i32
    return %c0_i32, %c0_i32_0, %arg0 : i32, i32, i32
  }
  func.func @transform_1(%arg0: i32) -> (i32, i32) {
    %c0_i32 = arith.constant 0 : i32
    %c0_i32_0 = arith.constant 0 : i32
    %c0_i32_1 = arith.constant 0 : i32
    return %c0_i32, %c0_i32_0 : i32, i32
  }
  func.func @transform_2(%arg0: i32) -> (i32, i32, i32) {
    %c0_i32 = arith.constant 0 : i32
    %c0_i32_0 = arith.constant 0 : i32
    %c0_i32_1 = arith.constant 0 : i32
    return %arg0, %c0_i32, %c0_i32_0 : i32, i32, i32
  }
  func.func @transform_3(%arg0: i32) -> (i32, i32, i32) {
    %c0_i32 = arith.constant 0 : i32
    %c0_i32_0 = arith.constant 0 : i32
    %c0_i32_1 = arith.constant 0 : i32
    return %arg0, %c0_i32, %c0_i32_0 : i32, i32, i32
  }
}

</mosaic_0001>

<llo_original>
// kernel: tpu_custom_call.1
$region0: #{tpu_custom_call.1}
  #allocation0 [shape = 'u32[]', space=smem, size = 0x4, offset = 0x4, fixed_abs, tag = 'smem constant byte address 0x4 - core index']
  #allocation1 [shape = 'u32[144,128]{1,0:T(1,128)}', space=vmem, size = 0x12000, scoped, tag = 'internal scratch']
  %s0 = inlined_call_operand.hbm [shape: f32[2,32,1024], index: 0, kind: input, shape index: {}]
  %s1 = inlined_call_operand.hbm [shape: f32[8,32], index: 1, kind: input, shape index: {}]
  %s2 = inlined_call_operand.hbm [shape: f32[4,2,256], index: 2, kind: output, shape index: {0}]
  %s3 = inlined_call_operand.hbm [shape: f32[4,2,10], index: 3, kind: output, shape index: {1}]
  %4 = xla_tuple %s2, %s3
  %s5 = sld [smem:[#allocation0]]
  $region57: #{tpu_custom_call.1} parent=0
    _
  %s7 = ssub.s32 1, %s5
  %s8 = scalar_select 0, %s7, %s5
  $region1: #{tpu_custom_call.1} parent=0
    #allocation2 [shape = 'u8[131072]{0}', space=vmem, size = 0x20000, scoped, tag = 'input window, operand 0']
    #allocation3 [shape = 's32[2]{0}', space=sflag, size = 0x8, scoped, tag = 'scoped memory for tpu_custom_call.1']
    #allocation4 [shape = 's32[2]{0}', space=sflag, size = 0x8, scoped, tag = 'scoped memory for tpu_custom_call.1']
    #allocation5 [shape = 'u8[4096]{0}', space=vmem, size = 0x1000, scoped, tag = 'input window, operand 1, single buffered']
    #allocation6 [shape = 's32[1]{0}', space=sflag, size = 0x4, scoped, tag = 'scoped memory for tpu_custom_call.1']
    #allocation7 [shape = 'u8[4096]{0}', space=vmem, size = 0x1000, scoped, tag = 'output window, operand 0']
    #allocation8 [shape = 'u8[2048]{0}', space=vmem, size = 0x800, scoped, tag = 'output window, operand 1']
    #allocation9 [shape = 's32[2]{0}', space=sflag, size = 0x8, scoped, tag = 'scoped memory for tpu_custom_call.1']
    %9 = vsyncpa [#allocation3], 0
    %s10 = scalar_lea.sflag [#allocation3], 1
    %11 = vsyncpa %s10, 0
    %12 = vsyncpa [#allocation6], 0
    %13 = vsyncpa [#allocation4], 0
    %s14 = scalar_lea.sflag [#allocation4], 1
    %15 = vsyncpa %s14, 0
    %16 = vsyncpa [#allocation9], 0
    %s17 = scalar_lea.sflag [#allocation9], 1
    %18 = vsyncpa %s17, 0
    loop: start=0, step=1, limit=6
    $region2: #{tpu_custom_call.1} parent=1 // loop_pre_header
      _
    $region3: #{tpu_custom_call.1} parent=1 // loop_header
      %s20 = sphi 0, %s24
      %p21 = scmp.ge.s32.totalorder %s20, 6
      %s30 = sphi 0, %s32
      %s33 = sphi 0, %s30
      %s34 = sphi 0, %s33
      %s50 = sphi 0, %s34
      %s54 = sphi 0, %s54
      %s56 = sphi 0, %s54
      %s57 = sphi 0, %s56
      %s71 = sphi 0, %s57
      %s77 = sphi 0, %s79
      %s80 = sphi 0, %s77
      %s81 = sphi 0, %s80
      %s97 = sphi 0, %s81
      %s103 = sphi 0, %s105
      %s106 = sphi 0, %s103
      %s107 = sphi 0, %s106
      %s123 = sphi 0, %s107
    $region4: #{tpu_custom_call.1} parent=1 // loop_header_branch
      %23 = sbr.rel (%p21) target = $region8
    $region5: #{tpu_custom_call.1} parent=1 // loop_body
      %s25 = ssub.s32 %s20, 1
      %s26 = ssub.s32 %s20, 2
      %s27 = sadd.s32 %s20, 1
      %s28 = ssub.s32 %s20, %s27
      %p29 = scmp.eq.s32.totalorder %s28, 0
      %s31 = sadd.s32 %s30, 1
      %s32 = scalar_select %p29, %s30, %s31
      %p35 = pneg %p29
      %p36 = scmp.eq.s32.totalorder %s20, 3
      %p37 = por %p35, %p36
      %p38 = scmp.ne.s32.totalorder %s30, %s33
      %p39 = scmp.eq.s32.totalorder %s20, 0
      %p40 = por %p38, %p39
      %p41 = scmp.ne.s32.totalorder %s30, %s33
      %p42 = scmp.eq.s32.totalorder %s25, 3
      %p43 = por %p41, %p42
      %p44 = scmp.ne.s32.totalorder %s33, %s34
      %p45 = scmp.eq.s32.totalorder %s25, 0
      %p46 = por %p44, %p45
      %p47 = scmp.ne.s32.totalorder %s33, %s34
      %p48 = scmp.eq.s32.totalorder %s26, 3
      %p49 = por %p47, %p48
      %p51 = scmp.ne.s32.totalorder %s34, %s50
      %p52 = scmp.eq.s32.totalorder %s26, 0
      %p53 = por %p51, %p52
      %s55 = sadd.s32 %s54, 1
      %p58 = scmp.eq.s32.totalorder %s20, 3
      %p59 = scmp.ne.s32.totalorder %s54, %s56
      %p60 = scmp.eq.s32.totalorder %s20, 0
      %p61 = por %p59, %p60
      %p62 = scmp.ne.s32.totalorder %s54, %s56
      %p63 = scmp.eq.s32.totalorder %s25, 3
      %p64 = por %p62, %p63
      %p65 = scmp.ne.s32.totalorder %s56, %s57
      %p66 = scmp.eq.s32.totalorder %s25, 0
      %p67 = por %p65, %p66
      %p68 = scmp.ne.s32.totalorder %s56, %s57
      %p69 = scmp.eq.s32.totalorder %s26, 3
      %p70 = por %p68, %p69
      %p72 = scmp.ne.s32.totalorder %s57, %s71
      %p73 = scmp.eq.s32.totalorder %s26, 0
      %p74 = por %p72, %p73
      %s75 = ssub.s32 %s20, %s27
      %p76 = scmp.eq.s32.totalorder %s75, 0
      %s78 = sadd.s32 %s77, 1
      %s79 = scalar_select %p76, %s77, %s78
      %p82 = pneg %p76
      %p83 = scmp.eq.s32.totalorder %s20, 3
      %p84 = por %p82, %p83
      %p85 = scmp.ne.s32.totalorder %s77, %s80
      %p86 = scmp.eq.s32.totalorder %s20, 0
      %p87 = por %p85, %p86
      %p88 = scmp.ne.s32.totalorder %s77, %s80
      %p89 = scmp.eq.s32.totalorder %s25, 3
      %p90 = por %p88, %p89
      %p91 = scmp.ne.s32.totalorder %s80, %s81
      %p92 = scmp.eq.s32.totalorder %s25, 0
      %p93 = por %p91, %p92
      %p94 = scmp.ne.s32.totalorder %s80, %s81
      %p95 = scmp.eq.s32.totalorder %s26, 3
      %p96 = por %p94, %p95
      %p98 = scmp.ne.s32.totalorder %s81, %s97
      %p99 = scmp.eq.s32.totalorder %s26, 0
      %p100 = por %p98, %p99
      %s101 = ssub.s32 %s20, %s27
      %p102 = scmp.eq.s32.totalorder %s101, 0
      %s104 = sadd.s32 %s103, 1
      %s105 = scalar_select %p102, %s103, %s104
      %p108 = pneg %p102
      %p109 = scmp.eq.s32.totalorder %s20, 3
      %p110 = por %p108, %p109
      %p111 = scmp.ne.s32.totalorder %s103, %s106
      %p112 = scmp.eq.s32.totalorder %s20, 0
      %p113 = por %p111, %p112
      %p114 = scmp.ne.s32.totalorder %s103, %s106
      %p115 = scmp.eq.s32.totalorder %s25, 3
      %p116 = por %p114, %p115
      %p117 = scmp.ne.s32.totalorder %s106, %s107
      %p118 = scmp.eq.s32.totalorder %s25, 0
      %p119 = por %p117, %p118
      %p120 = scmp.ne.s32.totalorder %s106, %s107
      %p121 = scmp.eq.s32.totalorder %s26, 3
      %p122 = por %p120, %p121
      %p124 = scmp.ne.s32.totalorder %s107, %s123
      %p125 = scmp.eq.s32.totalorder %s26, 0
      %p126 = por %p124, %p125
      %p127 = scmp.le.s32.totalorder 1, %s20
      %p128 = scmp.lt.s32.totalorder %s20, 5
      %p129 = pnand %p127, %p128
      %p130 = pneg %p129
      // Predicated region
      $region9: #{tpu_custom_call.1} parent=5 // pred_check
        _
      $region10: #{tpu_custom_call.1} parent=5 // pred_check_branch
        %132 = sbr.rel (%p129) target = $region12
      $region11: #{tpu_custom_call.1} parent=5 // pred_region
        %s133 = ssub.s32 %s20, 1
        // Predicated region
        $region13: #{tpu_custom_call.1} parent=11 // pred_check
          %p134 = pneg %p67
        $region14: #{tpu_custom_call.1} parent=11 // pred_check_branch
          %136 = sbr.rel (%p134) target = $region16
        $region15: #{tpu_custom_call.1} parent=11 // pred_region
          %s138 = ssub.s32 128, 128
          %139 = vsyncadd [#allocation6], %s138
          %s141 = sshll.u32 [#allocation5], 4
          %s142 = int_to_ptr.vmem [resolvable:$true] %s141
          %144 = dma.hbm_to_vmem [thread:$0]  %s1, 128, %s142, [#allocation6]
        $region16: #{tpu_custom_call.1} parent=11 // pred_fallthru
          _
      $region12: #{tpu_custom_call.1} parent=5 // pred_fallthru
        _
      %p145 = scmp.lt.s32.totalorder %s20, 4
      // Predicated region
      $region17: #{tpu_custom_call.1} parent=5 // pred_check
        %p146 = pneg %p145
      $region18: #{tpu_custom_call.1} parent=5 // pred_check_branch
        %148 = sbr.rel (%p146) target = $region20
      $region19: #{tpu_custom_call.1} parent=5 // pred_region
        // Predicated region
        $region21: #{tpu_custom_call.1} parent=19 // pred_check
          %p149 = pneg %p40
        $region22: #{tpu_custom_call.1} parent=19 // pred_check_branch
          %151 = sbr.rel (%p149) target = $region24
        $region23: #{tpu_custom_call.1} parent=19 // pred_region
          %s152 = sand.u32 %s30, 1
          %s153 = scalar_lea.sflag [#allocation3], %s152
          %s154 = sand.u32 %s30, 1
          %s155 = smul.addr %s154, 128
          %s156 = scalar_lea.vmem [#allocation2], %s155
          %s157 = smul.u32 2, %s20
          %s159 = ssub.s32 2048, 2048
          %160 = vsyncadd %s153, %s159
          %s161 = smul.addr %s157, 128
          %s162 = scalar_lea.hbm %s0, %s161
          %s163 = sshll.u32 %s156, 4
          %s164 = int_to_ptr.vmem [resolvable:$true] %s163
          %169 = dma.hbm_to_vmem [thread:$0]  %s162, 2048, %s164, %s153, 1024, 256, 16
        $region24: #{tpu_custom_call.1} parent=19 // pred_fallthru
          _
      $region20: #{tpu_custom_call.1} parent=5 // pred_fallthru
        _
      %p170 = scmp.le.s32.totalorder 1, %s20
      %p171 = scmp.lt.s32.totalorder %s20, 5
      %p172 = pnand %p170, %p171
      %p173 = pneg %p172
      // Predicated region
      $region25: #{tpu_custom_call.1} parent=5 // pred_check
        _
      $region26: #{tpu_custom_call.1} parent=5 // pred_check_branch
        %175 = sbr.rel (%p172) target = $region28
      $region27: #{tpu_custom_call.1} parent=5 // pred_region
        %s176 = ssub.s32 %s20, 1
        %s177 = sand.u32 %s33, 1
        %s178 = scalar_lea.sflag [#allocation3], %s177
        %s179 = sand.u32 %s33, 1
        %s180 = smul.addr %s179, 128
        %s181 = scalar_lea.vmem [#allocation2], %s180
        // Predicated region
        $region29: #{tpu_custom_call.1} parent=27 // pred_check
          %p182 = pneg %p46
        $region30: #{tpu_custom_call.1} parent=27 // pred_check_branch
          %184 = sbr.rel (%p182) target = $region32
        $region31: #{tpu_custom_call.1} parent=27 // pred_region
          %185 = dma.done %s178, 2048
        $region32: #{tpu_custom_call.1} parent=27 // pred_fallthru
          _
        // Predicated region
        $region33: #{tpu_custom_call.1} parent=27 // pred_check
          %p186 = pneg %p67
        $region34: #{tpu_custom_call.1} parent=27 // pred_check_branch
          %188 = sbr.rel (%p186) target = $region36
        $region35: #{tpu_custom_call.1} parent=27 // pred_region
          %189 = dma.done [#allocation6], 128
        $region36: #{tpu_custom_call.1} parent=27 // pred_fallthru
          _
        %s190 = sand.u32 %s33, 1
        %s191 = scalar_lea.sflag [#allocation3], %s190
        %s192 = sand.u32 %s33, 1
        %s193 = smul.addr %s192, 128
        %s194 = scalar_lea.vmem [#allocation2], %s193
        %p195 = pneg %p46
        %p196 = pneg %p43
        %p197 = pneg %p67
        %p198 = pneg %p64
        %p199 = pneg %p93
        %p200 = pneg %p90
        %s201 = sand.u32 %s80, 1
        %s202 = scalar_lea.sflag [#allocation4], %s201
        %s203 = sand.u32 %s80, 1
        %s204 = smul.addr %s203, 4
        %s205 = scalar_lea.vmem [#allocation7], %s204
        %p206 = pneg %p119
        %p207 = pneg %p116
        %s208 = sand.u32 %s106, 1
        %s209 = scalar_lea.sflag [#allocation9], %s208
        %s210 = sand.u32 %s106, 1
        %s211 = smul.addr %s210, 2
        %s212 = scalar_lea.vmem [#allocation8], %s211
        %s213 = smul.u32 2, %s25
        %v214 = vld [vmem:[%s181] sm:$0xff]
        %v215 = vld [vmem:[%s181 + $0x8] sm:$0xff]
        %v216 = vld [vmem:[%s181 + $0x10] sm:$0xff]
        %v217 = vld [vmem:[%s181 + $0x18] sm:$0xff]
        %v218 = vld [vmem:[%s181 + $0x20] sm:$0xff]
        %v219 = vld [vmem:[%s181 + $0x28] sm:$0xff]
        %v220 = vld [vmem:[%s181 + $0x30] sm:$0xff]
        %v221 = vld [vmem:[%s181 + $0x38] sm:$0xff]
        %v222 = vld [vmem:[%s181 + $0x40] sm:$0xff]
        %v223 = vld [vmem:[%s181 + $0x48] sm:$0xff]
        %v224 = vld [vmem:[%s181 + $0x50] sm:$0xff]
        %v225 = vld [vmem:[%s181 + $0x58] sm:$0xff]
        %v226 = vld [vmem:[%s181 + $0x60] sm:$0xff]
        %v227 = vld [vmem:[%s181 + $0x68] sm:$0xff]
        %v228 = vld [vmem:[%s181 + $0x70] sm:$0xff]
        %v229 = vld [vmem:[%s181 + $0x78] sm:$0xff]
        %v230 = vld [vmem:[#allocation5] sm:$0xff]
        %vm231 = vcmask 261120
        %v233 = vsel %vm231, %v230, 0
        %235 = vmatprep.subr.mxu0 0.0
        %236 = vmatpush1.msra.mxu0 0.0
        %237 = vmatprep.subr.mxu0 0.0
        %238 = vmatpush1.msra.mxu0 0.0
        %239 = vmatprep.subr.mxu0 0.0
        %240 = vmatpush1.msra.mxu0 0.0
        %241 = vmatprep.subr.mxu0 0.0
        %242 = vmatpush1.msra.mxu0 0.0
        %243 = vmatprep.subr.mxu0 0.0
        %244 = vmatpush1.msra.mxu0 0.0
        %245 = vmatprep.subr.mxu0 0.0
        %246 = vmatpush1.msra.mxu0 0.0
        %247 = vmatprep.subr.mxu0 0.0
        %248 = vmatpush1.msra.mxu0 0.0
        %249 = vmatprep.subr.mxu0 0.0
        %250 = vmatpush1.msra.mxu0 0.0
        %251 = vmatprep.subr.mxu0 0.0
        %252 = vmatpush1.msra.mxu0 0.0
        %253 = vmatprep.subr.mxu0 0.0
        %254 = vmatpush1.msra.mxu0 0.0
        %255 = vmatprep.subr.mxu0 0.0
        %256 = vmatpush1.msra.mxu0 0.0
        %257 = vmatprep.subr.mxu0 0.0
        %258 = vmatpush1.msra.mxu0 0.0
        %259 = vmatprep.subr.mxu0 %v221
        %260 = vmatpush1.msra.mxu0 %v220
        %261 = vmatprep.subr.mxu0 %v219
        %262 = vmatpush1.msra.mxu0 %v218
        %263 = vmatprep.subr.mxu0 %v217
        %264 = vmatpush1.msra.mxu0 %v216
        %265 = vmatprep.subr.mxu0 %v215
        %266 = vmatpush1.msra.mxu0 %v214
        %267 = vmatprep.subr.mxu0 0.0
        %268 = vmatpush2.msra.mxu0 0.0
        %269 = vmatprep.subr.mxu0 0.0
        %270 = vmatpush2.msra.mxu0 0.0
        %271 = vmatprep.subr.mxu0 0.0
        %272 = vmatpush2.msra.mxu0 0.0
        %273 = vmatprep.subr.mxu0 0.0
        %274 = vmatpush2.msra.mxu0 0.0
        %275 = vmatprep.subr.mxu0 0.0
        %276 = vmatpush2.msra.mxu0 0.0
        %277 = vmatprep.subr.mxu0 0.0
        %278 = vmatpush2.msra.mxu0 0.0
        %279 = vmatprep.subr.mxu0 0.0
        %280 = vmatpush2.msra.mxu0 0.0
        %281 = vmatprep.subr.mxu0 0.0
        %282 = vmatpush2.msra.mxu0 0.0
        %283 = vmatprep.subr.mxu0 0.0
        %284 = vmatpush2.msra.mxu0 0.0
        %285 = vmatprep.subr.mxu0 0.0
        %286 = vmatpush2.msra.mxu0 0.0
        %287 = vmatprep.subr.mxu0 0.0
        %288 = vmatpush2.msra.mxu0 0.0
        %289 = vmatprep.subr.mxu0 0.0
        %290 = vmatpush2.msra.mxu0 0.0
        %291 = vmatprep.subr.mxu0 0.0
        %292 = vmatpush2.msra.mxu0 0.0
        %293 = vmatprep.subr.mxu0 0.0
        %294 = vmatpush2.msra.mxu0 0.0
        %295 = vmatprep.subr.mxu0 0.0
        %296 = vmatpush2.msra.mxu0 0.0
        %297 = vmatprep.subr.mxu0 0.0
        %298 = vmatpush2.msra.mxu0 0.0
        %299 = vmatprep.mubr.f32.mxu0 0.0
        %300 = vmatmul.mubr.f32.gmra.mxu0 %v233
        %v301 = vpop.f32.mrf.mxu0
        %v302 = vadd.f32 0.0, %v301
        %v303 = vpop.f32.mrf.mxu0
        %v304 = vadd.f32 0.0, %v303
        %305 = vdwg.mxu0
        %306 = vmatprep.subr.mxu0 0.0
        %307 = vmatpush1.msra.mxu0 0.0
        %308 = vmatprep.subr.mxu0 0.0
        %309 = vmatpush1.msra.mxu0 0.0
        %310 = vmatprep.subr.mxu0 0.0
        %311 = vmatpush1.msra.mxu0 0.0
        %312 = vmatprep.subr.mxu0 0.0
        %313 = vmatpush1.msra.mxu0 0.0
        %314 = vmatprep.subr.mxu0 0.0
        %315 = vmatpush1.msra.mxu0 0.0
        %316 = vmatprep.subr.mxu0 0.0
        %317 = vmatpush1.msra.mxu0 0.0
        %318 = vmatprep.subr.mxu0 0.0
        %319 = vmatpush1.msra.mxu0 0.0
        %320 = vmatprep.subr.mxu0 0.0
        %321 = vmatpush1.msra.mxu0 0.0
        %322 = vmatprep.subr.mxu0 0.0
        %323 = vmatpush1.msra.mxu0 0.0
        %324 = vmatprep.subr.mxu0 0.0
        %325 = vmatpush1.msra.mxu0 0.0
        %326 = vmatprep.subr.mxu0 0.0
        %327 = vmatpush1.msra.mxu0 0.0
        %328 = vmatprep.subr.mxu0 0.0
        %329 = vmatpush1.msra.mxu0 0.0
        %330 = vmatprep.subr.mxu0 %v229
        %331 = vmatpush1.msra.mxu0 %v228
        %332 = vmatprep.subr.mxu0 %v227
        %333 = vmatpush1.msra.mxu0 %v226
        %334 = vmatprep.subr.mxu0 %v225
        %335 = vmatpush1.msra.mxu0 %v224
        %336 = vmatprep.subr.mxu0 %v223
        %337 = vmatpush1.msra.mxu0 %v222
        %338 = vmatprep.subr.mxu0 0.0
        %339 = vmatpush2.msra.mxu0 0.0
        %340 = vmatprep.subr.mxu0 0.0
        %341 = vmatpush2.msra.mxu0 0.0
        %342 = vmatprep.subr.mxu0 0.0
        %343 = vmatpush2.msra.mxu0 0.0
        %344 = vmatprep.subr.mxu0 0.0
        %345 = vmatpush2.msra.mxu0 0.0
        %346 = vmatprep.subr.mxu0 0.0
        %347 = vmatpush2.msra.mxu0 0.0
        %348 = vmatprep.subr.mxu0 0.0
        %349 = vmatpush2.msra.mxu0 0.0
        %350 = vmatprep.subr.mxu0 0.0
        %351 = vmatpush2.msra.mxu0 0.0
        %352 = vmatprep.subr.mxu0 0.0
        %353 = vmatpush2.msra.mxu0 0.0
        %354 = vmatprep.subr.mxu0 0.0
        %355 = vmatpush2.msra.mxu0 0.0
        %356 = vmatprep.subr.mxu0 0.0
        %357 = vmatpush2.msra.mxu0 0.0
        %358 = vmatprep.subr.mxu0 0.0
        %359 = vmatpush2.msra.mxu0 0.0
        %360 = vmatprep.subr.mxu0 0.0
        %361 = vmatpush2.msra.mxu0 0.0
        %362 = vmatprep.subr.mxu0 0.0
        %363 = vmatpush2.msra.mxu0 0.0
        %364 = vmatprep.subr.mxu0 0.0
        %365 = vmatpush2.msra.mxu0 0.0
        %366 = vmatprep.subr.mxu0 0.0
        %367 = vmatpush2.msra.mxu0 0.0
        %368 = vmatprep.subr.mxu0 0.0
        %369 = vmatpush2.msra.mxu0 0.0
        %370 = vmatprep.mubr.f32.mxu0 0.0
        %371 = vmatmul.mubr.f32.gmra.mxu0 %v233
        %v372 = vpop.f32.mrf.mxu0
        %v373 = vadd.f32 0.0, %v372
        %v374 = vpop.f32.mrf.mxu0
        %v375 = vadd.f32 0.0, %v374
        %376 = vdwg.mxu0
        %v377 = vlaneseq
        %v378 = vand.u32 %v377, 127
        %v379 = vlaneseq
        %v380 = vshrl.u32 %v379, 7
        %v381 = vmul.u32 %v380, 4
        %v382 = vstv %s25
        %v383 = vadd.s32 %v381, %v382
        %vm384 = vcmp.eq.s32.totalorder %v378, %v383
        %v385 = vsel %vm384, 1, 0
        %v386 = vcvt.s32.f32 %v385
        %v387 = vmul.f32 %v386, 100.0
        %v388 = vsub.f32 1.0, %v387
        %v389 = vlaneseq
        %v390 = vshrl.u32 %v389, 7
        %v391 = vsub.s32 0, %v390
        %v392 = vrot.slane %v386, %v391
        %394 = vbcast.lane.b32.xlu0 %v392, 256
        %v395 = vpop.permute.xlu0 %394
        %v396 = vlaneseq
        %v397 = vshrl.u32 %v396, 7
        %v398 = vsub.s32 1, %v397
        %v399 = vrot.slane %v386, %v398
        %401 = vbcast.lane.b32.xlu0 %v399, 256
        %v402 = vpop.permute.xlu0 %401
        %v403 = vmul.f32 %v302, %v395
        %v404 = vmul.f32 %v304, %v395
        %v405 = vmul.f32 %v373, %v402
        %v406 = vmul.f32 %v375, %v402
        %v407 = vrot.slane %v403, 4
        %v408 = vadd.f32 %v403, %v407
        %v409 = vrot.slane %v408, 2
        %v410 = vadd.f32 %v408, %v409
        %v411 = vrot.slane %v410, 1
        %v412 = vadd.f32 %v410, %v411
        %v413 = vrot.slane %v404, 4
        %v414 = vadd.f32 %v404, %v413
        %v415 = vrot.slane %v414, 2
        %v416 = vadd.f32 %v414, %v415
        %v417 = vrot.slane %v416, 1
        %v418 = vadd.f32 %v416, %v417
        %v419 = vrot.slane %v405, 4
        %v420 = vadd.f32 %v405, %v419
        %v421 = vrot.slane %v420, 2
        %v422 = vadd.f32 %v420, %v421
        %v423 = vrot.slane %v422, 1
        %v424 = vadd.f32 %v422, %v423
        %v425 = vrot.slane %v406, 4
        %v426 = vadd.f32 %v406, %v425
        %v427 = vrot.slane %v426, 2
        %v428 = vadd.f32 %v426, %v427
        %v429 = vrot.slane %v428, 1
        %v430 = vadd.f32 %v428, %v429
        %v431 = vsub.f32 %v302, 0.65
        %v432 = vsub.f32 %v304, 0.65
        %v433 = vsub.f32 %v373, 0.65
        %v434 = vsub.f32 %v375, 0.65
        %v435 = vmul.f32 %v431, 33.333332
        %v436 = vmul.f32 %v432, 33.333332
        %v437 = vmul.f32 %v433, 33.333332
        %v438 = vmul.f32 %v434, 33.333332
        %v439 = vxor.u32 %v435, 2147483648
        %v440 = vxor.u32 %v436, 2147483648
        %v441 = vxor.u32 %v437, 2147483648
        %v442 = vxor.u32 %v438, 2147483648
        %v443 = vmul.f32 %v439, 1.442695
        %v444 = vpow.pop %v443
        %v445 = vmul.f32 %v440, 1.442695
        %v446 = vpow.pop %v445
        %v447 = vmul.f32 %v441, 1.442695
        %v448 = vpow.pop %v447
        %v449 = vmul.f32 %v442, 1.442695
        %v450 = vpow.pop %v449
        %v451 = vadd.f32 %v444, 1.0
        %v452 = vadd.f32 %v446, 1.0
        %v453 = vadd.f32 %v448, 1.0
        %v454 = vadd.f32 %v450, 1.0
        %v455 = vrcp.pop %v451
        %v456 = vmul.f32 1.0, %v455
        %v457 = vrcp.pop %v452
        %v458 = vmul.f32 1.0, %v457
        %v459 = vrcp.pop %v453
        %v460 = vmul.f32 1.0, %v459
        %v461 = vrcp.pop %v454
        %v462 = vmul.f32 1.0, %v461
        %v463 = vsub.f32 %v412, 0.65
        %v464 = vsub.f32 %v418, 0.65
        %v465 = vsub.f32 %v424, 0.65
        %v466 = vsub.f32 %v430, 0.65
        %v467 = vmul.f32 %v463, 33.333332
        %v468 = vmul.f32 %v464, 33.333332
        %v469 = vmul.f32 %v465, 33.333332
        %v470 = vmul.f32 %v466, 33.333332
        %v471 = vxor.u32 %v467, 2147483648
        %v472 = vxor.u32 %v468, 2147483648
        %v473 = vxor.u32 %v469, 2147483648
        %v474 = vxor.u32 %v470, 2147483648
        %v475 = vmul.f32 %v471, 1.442695
        %v476 = vpow.pop %v475
        %v477 = vmul.f32 %v472, 1.442695
        %v478 = vpow.pop %v477
        %v479 = vmul.f32 %v473, 1.442695
        %v480 = vpow.pop %v479
        %v481 = vmul.f32 %v474, 1.442695
        %v482 = vpow.pop %v481
        %v483 = vadd.f32 %v476, 1.0
        %v484 = vadd.f32 %v478, 1.0
        %v485 = vadd.f32 %v480, 1.0
        %v486 = vadd.f32 %v482, 1.0
        %v487 = vrcp.pop %v483
        %v488 = vmul.f32 1.0, %v487
        %v489 = vrcp.pop %v484
        %v490 = vmul.f32 1.0, %v489
        %v491 = vrcp.pop %v485
        %v492 = vmul.f32 1.0, %v491
        %v493 = vrcp.pop %v486
        %v494 = vmul.f32 1.0, %v493
        %v495 = vsub.f32 %v412, 0.4
        %v496 = vsub.f32 %v418, 0.4
        %v497 = vsub.f32 %v424, 0.4
        %v498 = vsub.f32 %v430, 0.4
        %v499 = vmul.f32 %v495, 33.333332
        %v500 = vmul.f32 %v496, 33.333332
        %v501 = vmul.f32 %v497, 33.333332
        %v502 = vmul.f32 %v498, 33.333332
        %v503 = vxor.u32 %v499, 2147483648
        %v504 = vxor.u32 %v500, 2147483648
        %v505 = vxor.u32 %v501, 2147483648
        %v506 = vxor.u32 %v502, 2147483648
        %v507 = vmul.f32 %v503, 1.442695
        %v508 = vpow.pop %v507
        %v509 = vmul.f32 %v504, 1.442695
        %v510 = vpow.pop %v509
        %v511 = vmul.f32 %v505, 1.442695
        %v512 = vpow.pop %v511
        %v513 = vmul.f32 %v506, 1.442695
        %v514 = vpow.pop %v513
        %v515 = vadd.f32 %v508, 1.0
        %v516 = vadd.f32 %v510, 1.0
        %v517 = vadd.f32 %v512, 1.0
        %v518 = vadd.f32 %v514, 1.0
        %v519 = vrcp.pop %v515
        %v520 = vmul.f32 1.0, %v519
        %v521 = vrcp.pop %v516
        %v522 = vmul.f32 1.0, %v521
        %v523 = vrcp.pop %v517
        %v524 = vmul.f32 1.0, %v523
        %v525 = vrcp.pop %v518
        %v526 = vmul.f32 1.0, %v525
        %v527 = vsub.f32 1.0, %v520
        %v528 = vsub.f32 1.0, %v522
        %v529 = vsub.f32 1.0, %v524
        %v530 = vsub.f32 1.0, %v526
        %v531 = vmul.f32 %v456, %v302
        %v532 = vmul.f32 %v458, %v304
        %v533 = vmul.f32 %v460, %v373
        %v534 = vmul.f32 %v462, %v375
        %v535 = vadd.f32 %v531, %v532
        %536 = vadd.xlane.f32.xlu0 %v535
        %v537 = vpop.xlane.xlu0 %536
        %v538 = vadd.f32 %v533, %v534
        %539 = vadd.xlane.f32.xlu0 %v538
        %v540 = vpop.xlane.xlu0 %539
        %v541 = vadd.f32 %v456, %v458
        %542 = vadd.xlane.f32.xlu0 %v541
        %v543 = vpop.xlane.xlu0 %542
        %v544 = vadd.f32 %v460, %v462
        %545 = vadd.xlane.f32.xlu0 %v544
        %v546 = vpop.xlane.xlu0 %545
        %v547 = vrcp.pop %v543
        %v548 = vrcp.pop %v546
        %v549 = vmul.f32 %v537, %v547
        %v550 = vmul.f32 %v540, %v548
        %v551 = vmul.f32 %v488, %v412
        %v552 = vmul.f32 %v490, %v418
        %v553 = vmul.f32 %v492, %v424
        %v554 = vmul.f32 %v494, %v430
        %vm559 = vcmask 1041409
        %v560 = vsel %vm559, %v553, %v551
        %v561 = vsel %vm559, %v554, %v552
        %vm564 = vcmask 1041408
        %v565 = vsel %vm564, %v560, 0.0
        %v566 = vsel %vm564, %v561, 0.0
        %v567 = vadd.f32 %v565, %v566
        %568 = vadd.xlane.f32.xlu0 %v567
        %v569 = vpop.xlane.xlu0 %568
        %v574 = vsel %vm559, %v492, %v488
        %v575 = vsel %vm559, %v494, %v490
        %v578 = vsel %vm564, %v574, 0.0
        %v579 = vsel %vm564, %v575, 0.0
        %v580 = vadd.f32 %v578, %v579
        %581 = vadd.xlane.f32.xlu0 %v580
        %v582 = vpop.xlane.xlu0 %581
        %v583 = vrcp.pop %v582
        %v584 = vmul.f32 %v569, %v583
        %v585 = vmul.f32 %v527, %v412
        %v586 = vmul.f32 %v528, %v418
        %v587 = vmul.f32 %v529, %v424
        %v588 = vmul.f32 %v530, %v430
        %v593 = vsel %vm559, %v587, %v585
        %v594 = vsel %vm559, %v588, %v586
        %v597 = vsel %vm564, %v593, 0.0
        %v598 = vsel %vm564, %v594, 0.0
        %v599 = vadd.f32 %v597, %v598
        %600 = vadd.xlane.f32.xlu0 %v599
        %v601 = vpop.xlane.xlu0 %600
        %v606 = vsel %vm559, %v529, %v527
        %v607 = vsel %vm559, %v530, %v528
        %v610 = vsel %vm564, %v606, 0.0
        %v611 = vsel %vm564, %v607, 0.0
        %v612 = vadd.f32 %v610, %v611
        %613 = vadd.xlane.f32.xlu0 %v612
        %v614 = vpop.xlane.xlu0 %613
        %v615 = vrcp.pop %v614
        %v616 = vmul.f32 %v601, %v615
        %v621 = vcombine.low %v412, %v418
        %v623 = vunpack.c.l.s4 1983009808
        %v624 = vunpack.c.0.s8 %v623
        %v625 = vlaneseq
        %v626 = vshrl.u32 %v625, 7
        %v627 = vsub.s32 %v624, %v626
        %v628 = vrot.slane %v621, %v627
        %v629 = vcombine.low %v424, %v430
        %v631 = vunpack.c.l.s4 1983009808
        %v632 = vunpack.c.0.s8 %v631
        %v633 = vlaneseq
        %v634 = vshrl.u32 %v633, 7
        %v635 = vsub.s32 %v632, %v634
        %v636 = vrot.slane %v629, %v635
        %vm637 = vcmask 1044484
        %v638 = vsel %vm637, %v628, %v628
        %vm639 = vcmask 1046534
        %v640 = vsel %vm639, %v628, %v638
        %v641 = vrot.slane %v636, 7
        %v642 = vsel %vm559, %v641, %v640
        %vm643 = vcmask 1043459
        %v644 = vsel %vm643, %v641, %v642
        %vm645 = vcmask 1045509
        %v646 = vsel %vm645, %v641, %v644
        %vm647 = vcmask 1047559
        %v648 = vsel %vm647, %v641, %v646
        %650 = vst [vmem:[%s205] sm:$0xf] %v648
        %v651 = vmul.f32 %v584, 14.285714
        %vm652 = vcmask 1024
        %653 = vst.msk [vmem:[%s212] sm:$0x3] %vm652, %v651
        %v655 = vlaneseq
        %v656 = vshrl.u32 %v655, 7
        %v657 = vsub.s32 0, %v656
        %v658 = vrot.slane %v388, %v657
        %660 = vbcast.lane.b32.xlu0 %v658, 256
        %v661 = vpop.permute.xlu0 %660
        %v662 = vlaneseq
        %v663 = vshrl.u32 %v662, 7
        %v664 = vsub.s32 1, %v663
        %v665 = vrot.slane %v388, %v664
        %667 = vbcast.lane.b32.xlu0 %v665, 256
        %v668 = vpop.permute.xlu0 %667
        %v671 = vmul.f32 %v549, %v661
        %v672 = vmul.f32 %v550, %v668
        %v673 = vmul.f32 %v671, 14.285714
        %v674 = vmul.f32 %v672, 14.285714
        %677 = vset.pattern.permute.xlu0 0
        %678 = vperm.xlu0 %677, %v673
        %v679 = vpop.permute.xlu0 %678
        %680 = vset.pattern.permute.xlu0 0
        %681 = vperm.xlu0 %680, %v674
        %v682 = vpop.permute.xlu0 %681
        %v683 = vadd.s32 %v378, 4294967295
        %v684 = vlaneseq
        %v685 = vshrl.u32 %v684, 7
        %v686 = vsub.s32 %v683, %v685
        %v687 = vrot.slane %v679, %v686
        %v688 = vlaneseq
        %v689 = vshrl.u32 %v688, 7
        %v690 = vsub.s32 %v683, %v689
        %v691 = vrot.slane %v682, %v690
        %v692 = vsel %vm559, %v691, %v687
        %vm694 = vcmask 66568
        %695 = vst.msk [vmem:[%s212] sm:$0x3] %vm694, %v692
        %v696 = vmul.f32 %v616, 14.285714
        %vm697 = vcmask 74824
        %698 = vst.msk [vmem:[%s212] sm:$0x3] %vm697, %v696
        %s699 = sand.u32 %s80, 1
        %s700 = scalar_lea.sflag [#allocation4], %s699
        %s701 = sand.u32 %s80, 1
        %s702 = smul.addr %s701, 4
        %s703 = scalar_lea.vmem [#allocation7], %s702
        %s704 = sand.u32 %s106, 1
        %s705 = scalar_lea.sflag [#allocation9], %s704
        %s706 = sand.u32 %s106, 1
        %s707 = smul.addr %s706, 2
        %s708 = scalar_lea.vmem [#allocation8], %s707
        // Predicated region
        $region37: #{tpu_custom_call.1} parent=27 // pred_check
          %p709 = pneg %p90
        $region38: #{tpu_custom_call.1} parent=27 // pred_check_branch
          %711 = sbr.rel (%p709) target = $region40
        $region39: #{tpu_custom_call.1} parent=27 // pred_region
          %s713 = ssub.s32 64, 64
          %714 = vsyncadd %s700, %s713
          %s715 = smul.addr %s25, 2
          %s716 = smul.addr %s715, 32
          %s717 = scalar_lea.hbm %s2, %s716
          %s719 = sshll.u32 %s703, 4
          %s720 = int_to_ptr.vmem [resolvable:$true] %s719
          %722 = dma.vmem_to_hbm [thread:$0]  %s720, 64, %s717, %s700
        $region40: #{tpu_custom_call.1} parent=27 // pred_fallthru
          _
        // Predicated region
        $region41: #{tpu_custom_call.1} parent=27 // pred_check
          %p723 = pneg %p116
        $region42: #{tpu_custom_call.1} parent=27 // pred_check_branch
          %725 = sbr.rel (%p723) target = $region44
        $region43: #{tpu_custom_call.1} parent=27 // pred_region
          %s727 = ssub.s32 32, 32
          %728 = vsyncadd %s705, %s727
          %s729 = smul.addr %s25, 32
          %s730 = scalar_lea.hbm %s3, %s729
          %s732 = sshll.u32 %s708, 4
          %s733 = int_to_ptr.vmem [resolvable:$true] %s732
          %735 = dma.vmem_to_hbm [thread:$0]  %s733, 32, %s730, %s705
        $region44: #{tpu_custom_call.1} parent=27 // pred_fallthru
          _
      $region28: #{tpu_custom_call.1} parent=5 // pred_fallthru
        _
      %p736 = scmp.le.s32.totalorder 2, %s20
      // Predicated region
      $region45: #{tpu_custom_call.1} parent=5 // pred_check
        %p737 = pneg %p736
      $region46: #{tpu_custom_call.1} parent=5 // pred_check_branch
        %739 = sbr.rel (%p737) target = $region48
      $region47: #{tpu_custom_call.1} parent=5 // pred_region
        %s740 = ssub.s32 %s20, 2
        // Predicated region
        $region49: #{tpu_custom_call.1} parent=47 // pred_check
          %p741 = pneg %p96
        $region50: #{tpu_custom_call.1} parent=47 // pred_check_branch
          %743 = sbr.rel (%p741) target = $region52
        $region51: #{tpu_custom_call.1} parent=47 // pred_region
          %s744 = sand.u32 %s81, 1
          %s745 = scalar_lea.sflag [#allocation4], %s744
          %s746 = sand.u32 %s81, 1
          %s747 = smul.addr %s746, 4
          %s748 = scalar_lea.vmem [#allocation7], %s747
          %749 = dma.done %s745, 64
        $region52: #{tpu_custom_call.1} parent=47 // pred_fallthru
          _
        // Predicated region
        $region53: #{tpu_custom_call.1} parent=47 // pred_check
          %p750 = pneg %p122
        $region54: #{tpu_custom_call.1} parent=47 // pred_check_branch
          %752 = sbr.rel (%p750) target = $region56
        $region55: #{tpu_custom_call.1} parent=47 // pred_region
          %s753 = sand.u32 %s107, 1
          %s754 = scalar_lea.sflag [#allocation9], %s753
          %s755 = sand.u32 %s107, 1
          %s756 = smul.addr %s755, 2
          %s757 = scalar_lea.vmem [#allocation8], %s756
          %758 = dma.done %s754, 32
        $region56: #{tpu_custom_call.1} parent=47 // pred_fallthru
          _
      $region48: #{tpu_custom_call.1} parent=5 // pred_fallthru
        _
    $region6: #{tpu_custom_call.1} parent=1 // loop_footer
      %s24 = sadd.s32 1, %s20
    $region7: #{tpu_custom_call.1} parent=1 // loop_footer_branch
      %19 = sbr.rel target = $region3
    $region8: #{tpu_custom_call.1} parent=1 // loop_exit
      _
    %759 = vsyncpa [#allocation3], 1
    %s760 = scalar_lea.sflag [#allocation3], 1
    %761 = vsyncpa %s760, 1
    %762 = vsyncpa [#allocation6], 1
    %763 = vsyncpa [#allocation4], 1
    %s764 = scalar_lea.sflag [#allocation4], 1
    %765 = vsyncpa %s764, 1
    %766 = vsyncpa [#allocation9], 1
    %s767 = scalar_lea.sflag [#allocation9], 1
    %768 = vsyncpa %s767, 1

</llo_original>
